<compile_context>
chip_gen: v7x
topology: tpu7x:2x2x1
jax: 0.10.0
libtpu: 0.0.40
codegen_flags: <defaults>
</compile_context>

<pallas_src>
import functools

import jax
import jax.numpy as jnp
from jax.experimental import pallas as pl
from jax.experimental.pallas import tpu as pltpu


def user_embedding_kernel(fea_ref, table_ref, out_ref, *, num_fans):
    """One batch tile: fused block-diagonal one-hot gather of both embeddings.

    fea_ref:   (Bp, F) or (TB, F) int32 — col 0 = fans idx, col 1 = avgrating idx
    table_ref: (Pf+Pa, 2*D) f32 — block-diagonal combined table (VMEM-resident)
    out_ref:   (TB, 2*D) f32 — [:, :D] = fans_emb, [:, D:] = avgrating_emb
    """
    TB = out_ref.shape[0]
    P = table_ref.shape[0]

    if fea_ref.shape[0] == TB:
        # Per-tile (or single-tile) feature block.
        fea = fea_ref[...]
    else:
        # Whole-batch resident feature block: slice this tile's rows in-kernel.
        start = pl.multiple_of(pl.program_id(0) * TB, 8)
        fea = fea_ref[pl.ds(start, TB), :]

    fans_idx = fea[:, 0:1]                       # (TB, 1) rows [0, Pf)
    avg_idx = fea[:, 1:2] + num_fans             # (TB, 1) rows [Pf, Pf+Pa)

    # Single (TB, Pf+Pa) one-hot with two ones per row; the block-diagonal
    # combined table routes them to the left / right halves of the output.
    # NOTE: out-of-range / negative indices yield an all-zeros half (PyTorch
    # nn.Embedding would raise); callers must pass valid indices.
    lane = jax.lax.broadcasted_iota(jnp.int32, (TB, P), 1)
    onehot = ((lane == fans_idx) | (lane == avg_idx)).astype(table_ref.dtype)

    # One MXU matmul, one unmasked lane-dense (TB, 2*D) store.
    out_ref[...] = jnp.dot(
        onehot, table_ref[...], preferred_element_type=jnp.float32
    ).astype(out_ref.dtype)


def _pick_block_b(batch, requested):
    """Pick a batch tile: multiple of 8, <=512, divides B, >=2 tiles when possible."""
    if requested is not None:
        if requested % 8 != 0:
            raise ValueError("block_b must be a multiple of 8 (f32 sublane constraint)")
        return requested
    cap = 512
    best = None
    for b in range(8, min(cap, batch) + 1, 8):
        if batch % b == 0 and batch // b >= 2:
            best = b
    if best is not None:
        return best
    if batch % 8 == 0 and batch <= cap:
        return batch                       # small batch -> one tile, no padding
    return min(cap, ((batch + 7) // 8) * 8)  # ragged batch -> padded path


def user_embedding_yelp_forward(user_fea, fans_table, avgrating_table, *, block_b=None):
    """Pallas equivalent of UserEmbeddingYelp.forward.

    user_fea:        (B, F) int — column 0 = fans idx, column 1 = avgrating idx.
    fans_table:      (num_fans, D) float32.
    avgrating_table: (num_avgrating, D) float32.
    returns:         (B, 2*D) float32 == cat(fans_emb, avgrating_emb, dim=1).
    """
    B, F = user_fea.shape
    assert F >= 2, "user_fea needs at least the fans and avgrating columns"
    Pf, D = fans_table.shape
    Pa, Da = avgrating_table.shape
    assert D == Da, "both embeddings must share embedding_dim"
    # TODO(synk): if embedding_dim is ever not a multiple of 128, pad D up to 128
    # in the tables so the fused (TB, 2*D) store stays unmasked.

    out_dtype = fans_table.dtype
    itemsize = jnp.dtype(out_dtype).itemsize
    user_fea = user_fea.astype(jnp.int32)

    # Block-diagonal combined table (tiny, built once per call / hoisted under jit):
    # rows [0,Pf) carry fans in cols [0,D); rows [Pf,Pf+Pa) carry avgrating in cols [D,2D).
    P = Pf + Pa
    combined = jnp.zeros((P, 2 * D), out_dtype)
    combined = combined.at[:Pf, :D].set(fans_table)
    combined = combined.at[Pf:, D:].set(avgrating_table.astype(out_dtype))

    block_b = _pick_block_b(B, block_b)
    num_tiles = pl.cdiv(B, block_b)
    Bp = num_tiles * block_b
    if Bp != B:
        # TODO(synk): handle the ragged tail in-kernel instead of pad + slice copies.
        user_fea = jnp.pad(user_fea, ((0, Bp - B), (0, 0)))

    # user_fea rides in once as a resident block unless the batch is huge
    # (lane-padded footprint ~ Bp * 512 B); then fall back to per-tile blocks.
    fea_resident = Bp * 128 * 4 <= (4 << 20)
    if fea_resident:
        fea_spec = pl.BlockSpec((Bp, F), lambda i: (0, 0))
        fea_vmem = Bp * 128 * 4
    else:
        fea_spec = pl.BlockSpec((block_b, F), lambda i: (i, 0))
        fea_vmem = 2 * block_b * 128 * 4

    # Advisory cost for XLA's scheduler (fused one-hot matmul gather).
    flops = 2 * Bp * P * (2 * D)
    bytes_accessed = (user_fea.nbytes + combined.nbytes
                      + Bp * 2 * D * itemsize)

    # Rough VMEM need: resident combined table + feature block + double-buffered output tile.
    vmem_need = (P * 2 * D * itemsize
                 + fea_vmem
                 + 2 * block_b * 2 * D * itemsize)
    vmem_limit = None
    if vmem_need > 16 * 1024 * 1024:  # below every generation's scoped default
        try:
            vmem_cap = pltpu.get_tpu_info().vmem_capacity_bytes
        except Exception:
            vmem_cap = 64 * 1024 * 1024  # v7x has the smallest physical VMEM
        vmem_limit = min(int(vmem_need * 5 // 4), int(vmem_cap * 4 // 5))
        # TODO(synk): switch to a scalar-prefetch DMA row-gather once the tables
        # no longer fit comfortably in VMEM (especially on v7x's 64 MiB).

    kernel = functools.partial(user_embedding_kernel, num_fans=Pf)

    out = pl.pallas_call(
        kernel,
        out_shape=jax.ShapeDtypeStruct((Bp, 2 * D), out_dtype),
        grid=(num_tiles,),
        in_specs=[
            fea_spec,                                   # user_fea
            pl.BlockSpec((P, 2 * D), lambda i: (0, 0)),  # combined table (resident)
        ],
        out_specs=pl.BlockSpec((block_b, 2 * D), lambda i: (i, 0)),
        compiler_params=pltpu.CompilerParams(
            dimension_semantics=("parallel",),  # v7x: split batch across 2 TCs
            vmem_limit_bytes=vmem_limit,
        ),
        cost_estimate=pl.CostEstimate(
            flops=flops, transcendentals=0, bytes_accessed=bytes_accessed),
    )(user_fea, combined)

    return out[:B] if Bp != B else out


if __name__ == "__main__":
    # Config analogous to the PyTorch module's __init__.
    # embedding_dim=128 -> fused output width 256 lanes (unmasked stores, full MXU width).
    config = {"num_fans": 48, "num_avgrating": 16, "embedding_dim": 128}
    batch = 512  # adaptive tiling picks block_b=256 -> 2 tiles (both v7x TCs busy)

    key = jax.random.PRNGKey(0)
    k_fans, k_avg, k_fi, k_ai = jax.random.split(key, 4)

    # Deterministic parameter init: nn.Embedding default is N(0, 1).
    fans_table = jax.random.normal(
        k_fans, (config["num_fans"], config["embedding_dim"]), jnp.float32)
    avgrating_table = jax.random.normal(
        k_avg, (config["num_avgrating"], config["embedding_dim"]), jnp.float32)

    # Synthetic user_fea: column 0 in [0, num_fans), column 1 in [0, num_avgrating).
    fans_idx = jax.random.randint(k_fi, (batch,), 0, config["num_fans"], jnp.int32)
    avg_idx = jax.random.randint(k_ai, (batch,), 0, config["num_avgrating"], jnp.int32)
    user_fea = jnp.stack([fans_idx, avg_idx], axis=1)  # (B, 2) int32

    out = user_embedding_yelp_forward(user_fea, fans_table, avgrating_table)
    out = jax.block_until_ready(out)

    # Reference check (pure JAX gathers + concat, matching torch.cat(..., 1)).
    ref = jnp.concatenate(
        [fans_table[user_fea[:, 0]], avgrating_table[user_fea[:, 1]]], axis=1)
    assert out.shape == (batch, 2 * config["embedding_dim"])
    assert out.dtype == jnp.float32
    assert jnp.allclose(out, ref, atol=1e-6), "mismatch vs reference gather+concat"

    print("KERNEL_OK")
</pallas_src>

<mosaic_0001>
module attributes {stable_mosaic.version = 11 : i64} {
  func.func @user_embedding_kernel(%arg0: i32, %arg1: memref<512x2xi32, #tpu.memory_space<vmem>>, %arg2: memref<64x256xf32, #tpu.memory_space<vmem>>, %arg3: memref<256x256xf32, #tpu.memory_space<vmem>>) attributes {dimension_semantics = [#tpu.dimension_semantics<parallel>], iteration_bounds = array<i64: 2>, scalar_prefetch = 0 : i64, scratch_operands = 0 : i64, tpu.core_type = #tpu.core_type<tc>, window_params = [{pipeline_mode = #tpu.pipeline_mode<synchronous>, transform_indices = @transform_0, window_bounds = array<i64: 512, 2>}, {pipeline_mode = #tpu.pipeline_mode<synchronous>, transform_indices = @transform_1, window_bounds = array<i64: 64, 256>}, {transform_indices = @transform_2, window_bounds = array<i64: 256, 256>}]} {
    %c256_i32 = arith.constant 256 : i32
    %0 = arith.muli %arg0, %c256_i32 : i32
    %1 = tpu.assume_multiple %0, 8 : i32
    %2 = arith.index_cast %1 : i32 to index
    %c0 = arith.constant 0 : index
    %3 = vector.load %arg1[%2, %c0] : memref<512x2xi32, #tpu.memory_space<vmem>>, vector<256x2xi32>
    %4 = vector.extract_strided_slice %3 {offsets = [0, 0], sizes = [256, 1], strides = [1, 1]} : vector<256x2xi32> to vector<256x1xi32>
    %5 = vector.extract_strided_slice %3 {offsets = [0, 1], sizes = [256, 1], strides = [1, 1]} : vector<256x2xi32> to vector<256x1xi32>
    %c48_i32 = arith.constant 48 : i32
    %6 = vector.broadcast %c48_i32 : i32 to vector<256x1xi32>
    %7 = arith.addi %5, %6 : vector<256x1xi32>
    %8 = tpu.iota {dimensions = array<i32: 1>} : vector<256x64xi32>
    %9 = vector.broadcast %4 : vector<256x1xi32> to vector<256x64xi32>
    %10 = arith.cmpi eq, %8, %9 : vector<256x64xi32>
    %11 = vector.broadcast %7 : vector<256x1xi32> to vector<256x64xi32>
    %12 = arith.cmpi eq, %8, %11 : vector<256x64xi32>
    %13 = arith.ori %10, %12 : vector<256x64xi1>
    %14 = arith.extui %13 : vector<256x64xi1> to vector<256x64xi32>
    %15 = arith.sitofp %14 : vector<256x64xi32> to vector<256x64xf32>
    %c0_0 = arith.constant 0 : index
    %c0_1 = arith.constant 0 : index
    %16 = vector.load %arg2[%c0_0, %c0_1] : memref<64x256xf32, #tpu.memory_space<vmem>>, vector<64x256xf32>
    %cst = arith.constant dense<0.000000e+00> : vector<256x256xf32>
    %17 = tpu.matmul %15, %16, %cst {dimension_numbers = #tpu.dot_dimension_numbers<[1], [0], [0], [1], [0, 0, 1, 1], [], []>} : vector<256x64xf32>, vector<64x256xf32>, vector<256x256xf32> -> vector<256x256xf32>
    %c0_2 = arith.constant 0 : index
    %c0_3 = arith.constant 0 : index
    %18 = vector.load %arg3[%c0_2, %c0_3] : memref<256x256xf32, #tpu.memory_space<vmem>>, vector<256x256xf32>
    tpu.vector_store %arg3[%c0_2, %c0_3], %17 {strides = array<i32>} : memref<256x256xf32, #tpu.memory_space<vmem>>, vector<256x256xf32>,
    return
  }
  func.func @transform_0(%arg0: i32) -> (i32, i32) {
    %c0_i32 = arith.constant 0 : i32
    %c0_i32_0 = arith.constant 0 : i32
    %c0_i32_1 = arith.constant 0 : i32
    return %c0_i32, %c0_i32_0 : i32, i32
  }
  func.func @transform_1(%arg0: i32) -> (i32, i32) {
    %c0_i32 = arith.constant 0 : i32
    %c0_i32_0 = arith.constant 0 : i32
    %c0_i32_1 = arith.constant 0 : i32
    return %c0_i32, %c0_i32_0 : i32, i32
  }
  func.func @transform_2(%arg0: i32) -> (i32, i32) {
    %c0_i32 = arith.constant 0 : i32
    %c0_i32_0 = arith.constant 0 : i32
    return %arg0, %c0_i32 : i32, i32
  }
}

</mosaic_0001>

<llo_original>
// kernel: tpu_custom_call.1
$region0: #{tpu_custom_call.1}
  #allocation0 [shape = 'u32[]', space=smem, size = 0x4, offset = 0x4, fixed_abs, tag = 'smem constant byte address 0x4 - core index']
  #allocation1 [shape = 'u32[144,128]{1,0:T(1,128)}', space=vmem, size = 0x12000, scoped, tag = 'internal scratch']
  %s0 = inlined_call_operand.vmem [shape: s32[512,2], index: 0, kind: input, shape index: {}]
  %s1 = inlined_call_operand.vmem [shape: f32[64,256], index: 1, kind: input, shape index: {}]
  %s2 = inlined_call_operand.hbm [shape: f32[512,256], index: 2, kind: output, shape index: {}]
  %s3 = sld [smem:[#allocation0]]
  $region41: #{tpu_custom_call.1} parent=0
    _
  %s5 = ssub.s32 1, %s3
  %s6 = scalar_select 0, %s5, %s3
  $region1: #{tpu_custom_call.1} parent=0
    #allocation2 [shape = 'u8[524288]{0}', space=vmem, size = 0x80000, scoped, tag = 'output window, operand 0']
    #allocation3 [shape = 's32[2]{0}', space=sflag, size = 0x8, scoped, tag = 'scoped memory for tpu_custom_call.1']
    %7 = vsyncpa [#allocation3], 0
    %s8 = scalar_lea.sflag [#allocation3], 1
    %9 = vsyncpa %s8, 0
    loop: start=0, step=1, limit=4
    $region2: #{tpu_custom_call.1} parent=1 // loop_pre_header
      _
    $region3: #{tpu_custom_call.1} parent=1 // loop_header
      %s11 = sphi 0, %s15
      %p12 = scmp.ge.s32.totalorder %s11, 4
      %s19 = sphi 0, %s19
      %s21 = sphi 0, %s19
      %s22 = sphi 0, %s21
      %s36 = sphi 0, %s22
      %s40 = sphi 0, %s40
      %s42 = sphi 0, %s40
      %s43 = sphi 0, %s42
      %s57 = sphi 0, %s43
      %s63 = sphi 0, %s65
      %s66 = sphi 0, %s63
      %s67 = sphi 0, %s66
      %s83 = sphi 0, %s67
    $region4: #{tpu_custom_call.1} parent=1 // loop_header_branch
      %14 = sbr.rel (%p12) target = $region8
    $region5: #{tpu_custom_call.1} parent=1 // loop_body
      %s16 = ssub.s32 %s11, 1
      %s17 = ssub.s32 %s11, 2
      %s18 = sadd.s32 %s11, 1
      %s20 = sadd.s32 %s19, 1
      %p23 = scmp.eq.s32.totalorder %s11, 1
      %p24 = scmp.ne.s32.totalorder %s19, %s21
      %p25 = scmp.eq.s32.totalorder %s11, 0
      %p26 = por %p24, %p25
      %p27 = scmp.ne.s32.totalorder %s19, %s21
      %p28 = scmp.eq.s32.totalorder %s16, 1
      %p29 = por %p27, %p28
      %p30 = scmp.ne.s32.totalorder %s21, %s22
      %p31 = scmp.eq.s32.totalorder %s16, 0
      %p32 = por %p30, %p31
      %p33 = scmp.ne.s32.totalorder %s21, %s22
      %p34 = scmp.eq.s32.totalorder %s17, 1
      %p35 = por %p33, %p34
      %p37 = scmp.ne.s32.totalorder %s22, %s36
      %p38 = scmp.eq.s32.totalorder %s17, 0
      %p39 = por %p37, %p38
      %s41 = sadd.s32 %s40, 1
      %p44 = scmp.eq.s32.totalorder %s11, 1
      %p45 = scmp.ne.s32.totalorder %s40, %s42
      %p46 = scmp.eq.s32.totalorder %s11, 0
      %p47 = por %p45, %p46
      %p48 = scmp.ne.s32.totalorder %s40, %s42
      %p49 = scmp.eq.s32.totalorder %s16, 1
      %p50 = por %p48, %p49
      %p51 = scmp.ne.s32.totalorder %s42, %s43
      %p52 = scmp.eq.s32.totalorder %s16, 0
      %p53 = por %p51, %p52
      %p54 = scmp.ne.s32.totalorder %s42, %s43
      %p55 = scmp.eq.s32.totalorder %s17, 1
      %p56 = por %p54, %p55
      %p58 = scmp.ne.s32.totalorder %s43, %s57
      %p59 = scmp.eq.s32.totalorder %s17, 0
      %p60 = por %p58, %p59
      %s61 = ssub.s32 %s11, %s18
      %p62 = scmp.eq.s32.totalorder %s61, 0
      %s64 = sadd.s32 %s63, 1
      %s65 = scalar_select %p62, %s63, %s64
      %p68 = pneg %p62
      %p69 = scmp.eq.s32.totalorder %s11, 1
      %p70 = por %p68, %p69
      %p71 = scmp.ne.s32.totalorder %s63, %s66
      %p72 = scmp.eq.s32.totalorder %s11, 0
      %p73 = por %p71, %p72
      %p74 = scmp.ne.s32.totalorder %s63, %s66
      %p75 = scmp.eq.s32.totalorder %s16, 1
      %p76 = por %p74, %p75
      %p77 = scmp.ne.s32.totalorder %s66, %s67
      %p78 = scmp.eq.s32.totalorder %s16, 0
      %p79 = por %p77, %p78
      %p80 = scmp.ne.s32.totalorder %s66, %s67
      %p81 = scmp.eq.s32.totalorder %s17, 1
      %p82 = por %p80, %p81
      %p84 = scmp.ne.s32.totalorder %s67, %s83
      %p85 = scmp.eq.s32.totalorder %s17, 0
      %p86 = por %p84, %p85
      %p87 = scmp.le.s32.totalorder 1, %s11
      %p88 = scmp.lt.s32.totalorder %s11, 3
      %p89 = pnand %p87, %p88
      %p90 = pneg %p89
      // Predicated region
      $region9: #{tpu_custom_call.1} parent=5 // pred_check
        _
      $region10: #{tpu_custom_call.1} parent=5 // pred_check_branch
        %92 = sbr.rel (%p89) target = $region12
      $region11: #{tpu_custom_call.1} parent=5 // pred_region
        %s93 = ssub.s32 %s11, 1
        // Predicated region
        $region13: #{tpu_custom_call.1} parent=11 // pred_check
          %p94 = pneg %p32
        $region14: #{tpu_custom_call.1} parent=11 // pred_check_branch
          %96 = sbr.rel (%p94) target = $region16
        $region15: #{tpu_custom_call.1} parent=11 // pred_region
          _
        $region16: #{tpu_custom_call.1} parent=11 // pred_fallthru
          _
        // Predicated region
        $region17: #{tpu_custom_call.1} parent=11 // pred_check
          %p97 = pneg %p53
        $region18: #{tpu_custom_call.1} parent=11 // pred_check_branch
          %99 = sbr.rel (%p97) target = $region20
        $region19: #{tpu_custom_call.1} parent=11 // pred_region
          _
        $region20: #{tpu_custom_call.1} parent=11 // pred_fallthru
          _
      $region12: #{tpu_custom_call.1} parent=5 // pred_fallthru
        _
      %p100 = scmp.lt.s32.totalorder %s11, 2
      // Predicated region
      $region21: #{tpu_custom_call.1} parent=5 // pred_check
        %p101 = pneg %p100
      $region22: #{tpu_custom_call.1} parent=5 // pred_check_branch
        %103 = sbr.rel (%p101) target = $region24
      $region23: #{tpu_custom_call.1} parent=5 // pred_region
        _
      $region24: #{tpu_custom_call.1} parent=5 // pred_fallthru
        _
      %p104 = scmp.le.s32.totalorder 1, %s11
      %p105 = scmp.lt.s32.totalorder %s11, 3
      %p106 = pnand %p104, %p105
      %p107 = pneg %p106
      // Predicated region
      $region25: #{tpu_custom_call.1} parent=5 // pred_check
        _
      $region26: #{tpu_custom_call.1} parent=5 // pred_check_branch
        %109 = sbr.rel (%p106) target = $region28
      $region27: #{tpu_custom_call.1} parent=5 // pred_region
        %s110 = ssub.s32 %s11, 1
        %p111 = pneg %p32
        %p112 = pneg %p29
        %p113 = pneg %p53
        %p114 = pneg %p50
        %p115 = pneg %p79
        %p116 = pneg %p76
        %s117 = sand.u32 %s66, 1
        %s118 = scalar_lea.sflag [#allocation3], %s117
        %s119 = sand.u32 %s66, 1
        %s120 = smul.addr %s119, 512
        %s121 = scalar_lea.vmem [#allocation2], %s120
        %s122 = smul.u32 32, %s16
        %s123 = smul.u32 %s16, 256
        %s124 = scalar_lea.vmem %s0, %s123
        %v125 = vld [vmem:[%s124] sm:$0xff]
        %v126 = vld [vmem:[%s124 + $0x8] sm:$0xff]
        %v127 = vld [vmem:[%s124 + $0x10] sm:$0xff]
        %v128 = vld [vmem:[%s124 + $0x18] sm:$0xff]
        %v129 = vld [vmem:[%s124 + $0x20] sm:$0xff]
        %v130 = vld [vmem:[%s124 + $0x28] sm:$0xff]
        %v131 = vld [vmem:[%s124 + $0x30] sm:$0xff]
        %v132 = vld [vmem:[%s124 + $0x38] sm:$0xff]
        %v133 = vld [vmem:[%s124 + $0x40] sm:$0xff]
        %v134 = vld [vmem:[%s124 + $0x48] sm:$0xff]
        %v135 = vld [vmem:[%s124 + $0x50] sm:$0xff]
        %v136 = vld [vmem:[%s124 + $0x58] sm:$0xff]
        %v137 = vld [vmem:[%s124 + $0x60] sm:$0xff]
        %v138 = vld [vmem:[%s124 + $0x68] sm:$0xff]
        %v139 = vld [vmem:[%s124 + $0x70] sm:$0xff]
        %v140 = vld [vmem:[%s124 + $0x78] sm:$0xff]
        %v141 = vld [vmem:[%s124 + $0x80] sm:$0xff]
        %v142 = vld [vmem:[%s124 + $0x88] sm:$0xff]
        %v143 = vld [vmem:[%s124 + $0x90] sm:$0xff]
        %v144 = vld [vmem:[%s124 + $0x98] sm:$0xff]
        %v145 = vld [vmem:[%s124 + $0xa0] sm:$0xff]
        %v146 = vld [vmem:[%s124 + $0xa8] sm:$0xff]
        %v147 = vld [vmem:[%s124 + $0xb0] sm:$0xff]
        %v148 = vld [vmem:[%s124 + $0xb8] sm:$0xff]
        %v149 = vld [vmem:[%s124 + $0xc0] sm:$0xff]
        %v150 = vld [vmem:[%s124 + $0xc8] sm:$0xff]
        %v151 = vld [vmem:[%s124 + $0xd0] sm:$0xff]
        %v152 = vld [vmem:[%s124 + $0xd8] sm:$0xff]
        %v153 = vld [vmem:[%s124 + $0xe0] sm:$0xff]
        %v154 = vld [vmem:[%s124 + $0xe8] sm:$0xff]
        %v155 = vld [vmem:[%s124 + $0xf0] sm:$0xff]
        %v156 = vld [vmem:[%s124 + $0xf8] sm:$0xff]
        %v157 = vadd.s32 %v125, 48
        %v158 = vadd.s32 %v126, 48
        %v159 = vadd.s32 %v127, 48
        %v160 = vadd.s32 %v128, 48
        %v161 = vadd.s32 %v129, 48
        %v162 = vadd.s32 %v130, 48
        %v163 = vadd.s32 %v131, 48
        %v164 = vadd.s32 %v132, 48
        %v165 = vadd.s32 %v133, 48
        %v166 = vadd.s32 %v134, 48
        %v167 = vadd.s32 %v135, 48
        %v168 = vadd.s32 %v136, 48
        %v169 = vadd.s32 %v137, 48
        %v170 = vadd.s32 %v138, 48
        %v171 = vadd.s32 %v139, 48
        %v172 = vadd.s32 %v140, 48
        %v173 = vadd.s32 %v141, 48
        %v174 = vadd.s32 %v142, 48
        %v175 = vadd.s32 %v143, 48
        %v176 = vadd.s32 %v144, 48
        %v177 = vadd.s32 %v145, 48
        %v178 = vadd.s32 %v146, 48
        %v179 = vadd.s32 %v147, 48
        %v180 = vadd.s32 %v148, 48
        %v181 = vadd.s32 %v149, 48
        %v182 = vadd.s32 %v150, 48
        %v183 = vadd.s32 %v151, 48
        %v184 = vadd.s32 %v152, 48
        %v185 = vadd.s32 %v153, 48
        %v186 = vadd.s32 %v154, 48
        %v187 = vadd.s32 %v155, 48
        %v188 = vadd.s32 %v156, 48
        %v189 = vlaneseq
        %v190 = vand.u32 %v189, 127
        %191 = vset.pattern.permute.xlu0 0
        %192 = vperm.xlu0 %191, %v125
        %v193 = vpop.permute.xlu0 %192
        %194 = vset.pattern.permute.xlu0 0
        %195 = vperm.xlu0 %194, %v126
        %v196 = vpop.permute.xlu0 %195
        %197 = vset.pattern.permute.xlu0 0
        %198 = vperm.xlu0 %197, %v127
        %v199 = vpop.permute.xlu0 %198
        %200 = vset.pattern.permute.xlu0 0
        %201 = vperm.xlu0 %200, %v128
        %v202 = vpop.permute.xlu0 %201
        %203 = vset.pattern.permute.xlu0 0
        %204 = vperm.xlu0 %203, %v129
        %v205 = vpop.permute.xlu0 %204
        %206 = vset.pattern.permute.xlu0 0
        %207 = vperm.xlu0 %206, %v130
        %v208 = vpop.permute.xlu0 %207
        %209 = vset.pattern.permute.xlu0 0
        %210 = vperm.xlu0 %209, %v131
        %v211 = vpop.permute.xlu0 %210
        %212 = vset.pattern.permute.xlu0 0
        %213 = vperm.xlu0 %212, %v132
        %v214 = vpop.permute.xlu0 %213
        %215 = vset.pattern.permute.xlu0 0
        %216 = vperm.xlu0 %215, %v133
        %v217 = vpop.permute.xlu0 %216
        %218 = vset.pattern.permute.xlu0 0
        %219 = vperm.xlu0 %218, %v134
        %v220 = vpop.permute.xlu0 %219
        %221 = vset.pattern.permute.xlu0 0
        %222 = vperm.xlu0 %221, %v135
        %v223 = vpop.permute.xlu0 %222
        %224 = vset.pattern.permute.xlu0 0
        %225 = vperm.xlu0 %224, %v136
        %v226 = vpop.permute.xlu0 %225
        %227 = vset.pattern.permute.xlu0 0
        %228 = vperm.xlu0 %227, %v137
        %v229 = vpop.permute.xlu0 %228
        %230 = vset.pattern.permute.xlu0 0
        %231 = vperm.xlu0 %230, %v138
        %v232 = vpop.permute.xlu0 %231
        %233 = vset.pattern.permute.xlu0 0
        %234 = vperm.xlu0 %233, %v139
        %v235 = vpop.permute.xlu0 %234
        %236 = vset.pattern.permute.xlu0 0
        %237 = vperm.xlu0 %236, %v140
        %v238 = vpop.permute.xlu0 %237
        %239 = vset.pattern.permute.xlu0 0
        %240 = vperm.xlu0 %239, %v141
        %v241 = vpop.permute.xlu0 %240
        %242 = vset.pattern.permute.xlu0 0
        %243 = vperm.xlu0 %242, %v142
        %v244 = vpop.permute.xlu0 %243
        %245 = vset.pattern.permute.xlu0 0
        %246 = vperm.xlu0 %245, %v143
        %v247 = vpop.permute.xlu0 %246
        %248 = vset.pattern.permute.xlu0 0
        %249 = vperm.xlu0 %248, %v144
        %v250 = vpop.permute.xlu0 %249
        %251 = vset.pattern.permute.xlu0 0
        %252 = vperm.xlu0 %251, %v145
        %v253 = vpop.permute.xlu0 %252
        %254 = vset.pattern.permute.xlu0 0
        %255 = vperm.xlu0 %254, %v146
        %v256 = vpop.permute.xlu0 %255
        %257 = vset.pattern.permute.xlu0 0
        %258 = vperm.xlu0 %257, %v147
        %v259 = vpop.permute.xlu0 %258
        %260 = vset.pattern.permute.xlu0 0
        %261 = vperm.xlu0 %260, %v148
        %v262 = vpop.permute.xlu0 %261
        %263 = vset.pattern.permute.xlu0 0
        %264 = vperm.xlu0 %263, %v149
        %v265 = vpop.permute.xlu0 %264
        %266 = vset.pattern.permute.xlu0 0
        %267 = vperm.xlu0 %266, %v150
        %v268 = vpop.permute.xlu0 %267
        %269 = vset.pattern.permute.xlu0 0
        %270 = vperm.xlu0 %269, %v151
        %v271 = vpop.permute.xlu0 %270
        %272 = vset.pattern.permute.xlu0 0
        %273 = vperm.xlu0 %272, %v152
        %v274 = vpop.permute.xlu0 %273
        %275 = vset.pattern.permute.xlu0 0
        %276 = vperm.xlu0 %275, %v153
        %v277 = vpop.permute.xlu0 %276
        %278 = vset.pattern.permute.xlu0 0
        %279 = vperm.xlu0 %278, %v154
        %v280 = vpop.permute.xlu0 %279
        %281 = vset.pattern.permute.xlu0 0
        %282 = vperm.xlu0 %281, %v155
        %v283 = vpop.permute.xlu0 %282
        %284 = vset.pattern.permute.xlu0 0
        %285 = vperm.xlu0 %284, %v156
        %v286 = vpop.permute.xlu0 %285
        %vm287 = vcmp.eq.s32.totalorder %v190, %v193
        %vm288 = vcmp.eq.s32.totalorder %v190, %v196
        %vm289 = vcmp.eq.s32.totalorder %v190, %v199
        %vm290 = vcmp.eq.s32.totalorder %v190, %v202
        %vm291 = vcmp.eq.s32.totalorder %v190, %v205
        %vm292 = vcmp.eq.s32.totalorder %v190, %v208
        %vm293 = vcmp.eq.s32.totalorder %v190, %v211
        %vm294 = vcmp.eq.s32.totalorder %v190, %v214
        %vm295 = vcmp.eq.s32.totalorder %v190, %v217
        %vm296 = vcmp.eq.s32.totalorder %v190, %v220
        %vm297 = vcmp.eq.s32.totalorder %v190, %v223
        %vm298 = vcmp.eq.s32.totalorder %v190, %v226
        %vm299 = vcmp.eq.s32.totalorder %v190, %v229
        %vm300 = vcmp.eq.s32.totalorder %v190, %v232
        %vm301 = vcmp.eq.s32.totalorder %v190, %v235
        %vm302 = vcmp.eq.s32.totalorder %v190, %v238
        %vm303 = vcmp.eq.s32.totalorder %v190, %v241
        %vm304 = vcmp.eq.s32.totalorder %v190, %v244
        %vm305 = vcmp.eq.s32.totalorder %v190, %v247
        %vm306 = vcmp.eq.s32.totalorder %v190, %v250
        %vm307 = vcmp.eq.s32.totalorder %v190, %v253
        %vm308 = vcmp.eq.s32.totalorder %v190, %v256
        %vm309 = vcmp.eq.s32.totalorder %v190, %v259
        %vm310 = vcmp.eq.s32.totalorder %v190, %v262
        %vm311 = vcmp.eq.s32.totalorder %v190, %v265
        %vm312 = vcmp.eq.s32.totalorder %v190, %v268
        %vm313 = vcmp.eq.s32.totalorder %v190, %v271
        %vm314 = vcmp.eq.s32.totalorder %v190, %v274
        %vm315 = vcmp.eq.s32.totalorder %v190, %v277
        %vm316 = vcmp.eq.s32.totalorder %v190, %v280
        %vm317 = vcmp.eq.s32.totalorder %v190, %v283
        %vm318 = vcmp.eq.s32.totalorder %v190, %v286
        %319 = vset.pattern.permute.xlu0 1
        %320 = vperm.xlu0 %319, %v157
        %v321 = vpop.permute.xlu0 %320
        %322 = vset.pattern.permute.xlu0 1
        %323 = vperm.xlu0 %322, %v158
        %v324 = vpop.permute.xlu0 %323
        %325 = vset.pattern.permute.xlu0 1
        %326 = vperm.xlu0 %325, %v159
        %v327 = vpop.permute.xlu0 %326
        %328 = vset.pattern.permute.xlu0 1
        %329 = vperm.xlu0 %328, %v160
        %v330 = vpop.permute.xlu0 %329
        %331 = vset.pattern.permute.xlu0 1
        %332 = vperm.xlu0 %331, %v161
        %v333 = vpop.permute.xlu0 %332
        %334 = vset.pattern.permute.xlu0 1
        %335 = vperm.xlu0 %334, %v162
        %v336 = vpop.permute.xlu0 %335
        %337 = vset.pattern.permute.xlu0 1
        %338 = vperm.xlu0 %337, %v163
        %v339 = vpop.permute.xlu0 %338
        %340 = vset.pattern.permute.xlu0 1
        %341 = vperm.xlu0 %340, %v164
        %v342 = vpop.permute.xlu0 %341
        %343 = vset.pattern.permute.xlu0 1
        %344 = vperm.xlu0 %343, %v165
        %v345 = vpop.permute.xlu0 %344
        %346 = vset.pattern.permute.xlu0 1
        %347 = vperm.xlu0 %346, %v166
        %v348 = vpop.permute.xlu0 %347
        %349 = vset.pattern.permute.xlu0 1
        %350 = vperm.xlu0 %349, %v167
        %v351 = vpop.permute.xlu0 %350
        %352 = vset.pattern.permute.xlu0 1
        %353 = vperm.xlu0 %352, %v168
        %v354 = vpop.permute.xlu0 %353
        %355 = vset.pattern.permute.xlu0 1
        %356 = vperm.xlu0 %355, %v169
        %v357 = vpop.permute.xlu0 %356
        %358 = vset.pattern.permute.xlu0 1
        %359 = vperm.xlu0 %358, %v170
        %v360 = vpop.permute.xlu0 %359
        %361 = vset.pattern.permute.xlu0 1
        %362 = vperm.xlu0 %361, %v171
        %v363 = vpop.permute.xlu0 %362
        %364 = vset.pattern.permute.xlu0 1
        %365 = vperm.xlu0 %364, %v172
        %v366 = vpop.permute.xlu0 %365
        %367 = vset.pattern.permute.xlu0 1
        %368 = vperm.xlu0 %367, %v173
        %v369 = vpop.permute.xlu0 %368
        %370 = vset.pattern.permute.xlu0 1
        %371 = vperm.xlu0 %370, %v174
        %v372 = vpop.permute.xlu0 %371
        %373 = vset.pattern.permute.xlu0 1
        %374 = vperm.xlu0 %373, %v175
        %v375 = vpop.permute.xlu0 %374
        %376 = vset.pattern.permute.xlu0 1
        %377 = vperm.xlu0 %376, %v176
        %v378 = vpop.permute.xlu0 %377
        %379 = vset.pattern.permute.xlu0 1
        %380 = vperm.xlu0 %379, %v177
        %v381 = vpop.permute.xlu0 %380
        %382 = vset.pattern.permute.xlu0 1
        %383 = vperm.xlu0 %382, %v178
        %v384 = vpop.permute.xlu0 %383
        %385 = vset.pattern.permute.xlu0 1
        %386 = vperm.xlu0 %385, %v179
        %v387 = vpop.permute.xlu0 %386
        %388 = vset.pattern.permute.xlu0 1
        %389 = vperm.xlu0 %388, %v180
        %v390 = vpop.permute.xlu0 %389
        %391 = vset.pattern.permute.xlu0 1
        %392 = vperm.xlu0 %391, %v181
        %v393 = vpop.permute.xlu0 %392
        %394 = vset.pattern.permute.xlu0 1
        %395 = vperm.xlu0 %394, %v182
        %v396 = vpop.permute.xlu0 %395
        %397 = vset.pattern.permute.xlu0 1
        %398 = vperm.xlu0 %397, %v183
        %v399 = vpop.permute.xlu0 %398
        %400 = vset.pattern.permute.xlu0 1
        %401 = vperm.xlu0 %400, %v184
        %v402 = vpop.permute.xlu0 %401
        %403 = vset.pattern.permute.xlu0 1
        %404 = vperm.xlu0 %403, %v185
        %v405 = vpop.permute.xlu0 %404
        %406 = vset.pattern.permute.xlu0 1
        %407 = vperm.xlu0 %406, %v186
        %v408 = vpop.permute.xlu0 %407
        %409 = vset.pattern.permute.xlu0 1
        %410 = vperm.xlu0 %409, %v187
        %v411 = vpop.permute.xlu0 %410
        %412 = vset.pattern.permute.xlu0 1
        %413 = vperm.xlu0 %412, %v188
        %v414 = vpop.permute.xlu0 %413
        %vm415 = vcmp.eq.s32.totalorder %v190, %v321
        %vm416 = vcmp.eq.s32.totalorder %v190, %v324
        %vm417 = vcmp.eq.s32.totalorder %v190, %v327
        %vm418 = vcmp.eq.s32.totalorder %v190, %v330
        %vm419 = vcmp.eq.s32.totalorder %v190, %v333
        %vm420 = vcmp.eq.s32.totalorder %v190, %v336
        %vm421 = vcmp.eq.s32.totalorder %v190, %v339
        %vm422 = vcmp.eq.s32.totalorder %v190, %v342
        %vm423 = vcmp.eq.s32.totalorder %v190, %v345
        %vm424 = vcmp.eq.s32.totalorder %v190, %v348
        %vm425 = vcmp.eq.s32.totalorder %v190, %v351
        %vm426 = vcmp.eq.s32.totalorder %v190, %v354
        %vm427 = vcmp.eq.s32.totalorder %v190, %v357
        %vm428 = vcmp.eq.s32.totalorder %v190, %v360
        %vm429 = vcmp.eq.s32.totalorder %v190, %v363
        %vm430 = vcmp.eq.s32.totalorder %v190, %v366
        %vm431 = vcmp.eq.s32.totalorder %v190, %v369
        %vm432 = vcmp.eq.s32.totalorder %v190, %v372
        %vm433 = vcmp.eq.s32.totalorder %v190, %v375
        %vm434 = vcmp.eq.s32.totalorder %v190, %v378
        %vm435 = vcmp.eq.s32.totalorder %v190, %v381
        %vm436 = vcmp.eq.s32.totalorder %v190, %v384
        %vm437 = vcmp.eq.s32.totalorder %v190, %v387
        %vm438 = vcmp.eq.s32.totalorder %v190, %v390
        %vm439 = vcmp.eq.s32.totalorder %v190, %v393
        %vm440 = vcmp.eq.s32.totalorder %v190, %v396
        %vm441 = vcmp.eq.s32.totalorder %v190, %v399
        %vm442 = vcmp.eq.s32.totalorder %v190, %v402
        %vm443 = vcmp.eq.s32.totalorder %v190, %v405
        %vm444 = vcmp.eq.s32.totalorder %v190, %v408
        %vm445 = vcmp.eq.s32.totalorder %v190, %v411
        %vm446 = vcmp.eq.s32.totalorder %v190, %v414
        %vm447 = vmor %vm287, %vm415
        %vm448 = vmor %vm288, %vm416
        %vm449 = vmor %vm289, %vm417
        %vm450 = vmor %vm290, %vm418
        %vm451 = vmor %vm291, %vm419
        %vm452 = vmor %vm292, %vm420
        %vm453 = vmor %vm293, %vm421
        %vm454 = vmor %vm294, %vm422
        %vm455 = vmor %vm295, %vm423
        %vm456 = vmor %vm296, %vm424
        %vm457 = vmor %vm297, %vm425
        %vm458 = vmor %vm298, %vm426
        %vm459 = vmor %vm299, %vm427
        %vm460 = vmor %vm300, %vm428
        %vm461 = vmor %vm301, %vm429
        %vm462 = vmor %vm302, %vm430
        %vm463 = vmor %vm303, %vm431
        %vm464 = vmor %vm304, %vm432
        %vm465 = vmor %vm305, %vm433
        %vm466 = vmor %vm306, %vm434
        %vm467 = vmor %vm307, %vm435
        %vm468 = vmor %vm308, %vm436
        %vm469 = vmor %vm309, %vm437
        %vm470 = vmor %vm310, %vm438
        %vm471 = vmor %vm311, %vm439
        %vm472 = vmor %vm312, %vm440
        %vm473 = vmor %vm313, %vm441
        %vm474 = vmor %vm314, %vm442
        %vm475 = vmor %vm315, %vm443
        %vm476 = vmor %vm316, %vm444
        %vm477 = vmor %vm317, %vm445
        %vm478 = vmor %vm318, %vm446
        %v479 = vsel %vm447, 1, 0
        %v480 = vsel %vm448, 1, 0
        %v481 = vsel %vm449, 1, 0
        %v482 = vsel %vm450, 1, 0
        %v483 = vsel %vm451, 1, 0
        %v484 = vsel %vm452, 1, 0
        %v485 = vsel %vm453, 1, 0
        %v486 = vsel %vm454, 1, 0
        %v487 = vsel %vm455, 1, 0
        %v488 = vsel %vm456, 1, 0
        %v489 = vsel %vm457, 1, 0
        %v490 = vsel %vm458, 1, 0
        %v491 = vsel %vm459, 1, 0
        %v492 = vsel %vm460, 1, 0
        %v493 = vsel %vm461, 1, 0
        %v494 = vsel %vm462, 1, 0
        %v495 = vsel %vm463, 1, 0
        %v496 = vsel %vm464, 1, 0
        %v497 = vsel %vm465, 1, 0
        %v498 = vsel %vm466, 1, 0
        %v499 = vsel %vm467, 1, 0
        %v500 = vsel %vm468, 1, 0
        %v501 = vsel %vm469, 1, 0
        %v502 = vsel %vm470, 1, 0
        %v503 = vsel %vm471, 1, 0
        %v504 = vsel %vm472, 1, 0
        %v505 = vsel %vm473, 1, 0
        %v506 = vsel %vm474, 1, 0
        %v507 = vsel %vm475, 1, 0
        %v508 = vsel %vm476, 1, 0
        %v509 = vsel %vm477, 1, 0
        %v510 = vsel %vm478, 1, 0
        %v511 = vcvt.s32.f32 %v479
        %v512 = vcvt.s32.f32 %v480
        %v513 = vcvt.s32.f32 %v481
        %v514 = vcvt.s32.f32 %v482
        %v515 = vcvt.s32.f32 %v483
        %v516 = vcvt.s32.f32 %v484
        %v517 = vcvt.s32.f32 %v485
        %v518 = vcvt.s32.f32 %v486
        %v519 = vcvt.s32.f32 %v487
        %v520 = vcvt.s32.f32 %v488
        %v521 = vcvt.s32.f32 %v489
        %v522 = vcvt.s32.f32 %v490
        %v523 = vcvt.s32.f32 %v491
        %v524 = vcvt.s32.f32 %v492
        %v525 = vcvt.s32.f32 %v493
        %v526 = vcvt.s32.f32 %v494
        %v527 = vcvt.s32.f32 %v495
        %v528 = vcvt.s32.f32 %v496
        %v529 = vcvt.s32.f32 %v497
        %v530 = vcvt.s32.f32 %v498
        %v531 = vcvt.s32.f32 %v499
        %v532 = vcvt.s32.f32 %v500
        %v533 = vcvt.s32.f32 %v501
        %v534 = vcvt.s32.f32 %v502
        %v535 = vcvt.s32.f32 %v503
        %v536 = vcvt.s32.f32 %v504
        %v537 = vcvt.s32.f32 %v505
        %v538 = vcvt.s32.f32 %v506
        %v539 = vcvt.s32.f32 %v507
        %v540 = vcvt.s32.f32 %v508
        %v541 = vcvt.s32.f32 %v509
        %v542 = vcvt.s32.f32 %v510
        %v543 = vld [vmem:[%s1] sm:$0xff]
        %v544 = vld [vmem:[%s1 + $0x8] sm:$0xff]
        %v545 = vld [vmem:[%s1 + $0x10] sm:$0xff]
        %v546 = vld [vmem:[%s1 + $0x18] sm:$0xff]
        %v547 = vld [vmem:[%s1 + $0x20] sm:$0xff]
        %v548 = vld [vmem:[%s1 + $0x28] sm:$0xff]
        %v549 = vld [vmem:[%s1 + $0x30] sm:$0xff]
        %v550 = vld [vmem:[%s1 + $0x38] sm:$0xff]
        %v551 = vld [vmem:[%s1 + $0x40] sm:$0xff]
        %v552 = vld [vmem:[%s1 + $0x48] sm:$0xff]
        %v553 = vld [vmem:[%s1 + $0x50] sm:$0xff]
        %v554 = vld [vmem:[%s1 + $0x58] sm:$0xff]
        %v555 = vld [vmem:[%s1 + $0x60] sm:$0xff]
        %v556 = vld [vmem:[%s1 + $0x68] sm:$0xff]
        %v557 = vld [vmem:[%s1 + $0x70] sm:$0xff]
        %v558 = vld [vmem:[%s1 + $0x78] sm:$0xff]
        %vm559 = vcmask 523264
        %v561 = vsel %vm559, %v511, 0
        %v564 = vsel %vm559, %v512, 0
        %v567 = vsel %vm559, %v513, 0
        %v570 = vsel %vm559, %v514, 0
        %v573 = vsel %vm559, %v515, 0
        %v576 = vsel %vm559, %v516, 0
        %v579 = vsel %vm559, %v517, 0
        %v582 = vsel %vm559, %v518, 0
        %v585 = vsel %vm559, %v519, 0
        %v588 = vsel %vm559, %v520, 0
        %v591 = vsel %vm559, %v521, 0
        %v594 = vsel %vm559, %v522, 0
        %v597 = vsel %vm559, %v523, 0
        %v600 = vsel %vm559, %v524, 0
        %v603 = vsel %vm559, %v525, 0
        %v606 = vsel %vm559, %v526, 0
        %v609 = vsel %vm559, %v527, 0
        %v612 = vsel %vm559, %v528, 0
        %v615 = vsel %vm559, %v529, 0
        %v618 = vsel %vm559, %v530, 0
        %v621 = vsel %vm559, %v531, 0
        %v624 = vsel %vm559, %v532, 0
        %v627 = vsel %vm559, %v533, 0
        %v630 = vsel %vm559, %v534, 0
        %v633 = vsel %vm559, %v535, 0
        %v636 = vsel %vm559, %v536, 0
        %v639 = vsel %vm559, %v537, 0
        %v642 = vsel %vm559, %v538, 0
        %v645 = vsel %vm559, %v539, 0
        %v648 = vsel %vm559, %v540, 0
        %v651 = vsel %vm559, %v541, 0
        %v654 = vsel %vm559, %v542, 0
        %656 = vmatprep.subr.mxu0 %v544
        %657 = vmatpush1.msra.mxu0 %v543
        %658 = vmatprep.subr.mxu0 %v546
        %659 = vmatpush1.msra.mxu0 %v545
        %660 = vmatprep.subr.mxu0 %v548
        %661 = vmatpush1.msra.mxu0 %v547
        %662 = vmatprep.subr.mxu0 %v550
        %663 = vmatpush1.msra.mxu0 %v549
        %664 = vmatprep.subr.mxu0 %v552
        %665 = vmatpush1.msra.mxu0 %v551
        %666 = vmatprep.subr.mxu0 %v554
        %667 = vmatpush1.msra.mxu0 %v553
        %668 = vmatprep.subr.mxu0 %v556
        %669 = vmatpush1.msra.mxu0 %v555
        %670 = vmatprep.subr.mxu0 %v558
        %671 = vmatpush1.msra.mxu0 %v557
        %672 = vmatprep.subr.mxu0 0.0
        %673 = vmatpush1.msra.mxu0 0.0
        %674 = vmatprep.subr.mxu0 0.0
        %675 = vmatpush1.msra.mxu0 0.0
        %676 = vmatprep.subr.mxu0 0.0
        %677 = vmatpush1.msra.mxu0 0.0
        %678 = vmatprep.subr.mxu0 0.0
        %679 = vmatpush1.msra.mxu0 0.0
        %680 = vmatprep.subr.mxu0 0.0
        %681 = vmatpush1.msra.mxu0 0.0
        %682 = vmatprep.subr.mxu0 0.0
        %683 = vmatpush1.msra.mxu0 0.0
        %684 = vmatprep.subr.mxu0 0.0
        %685 = vmatpush1.msra.mxu0 0.0
        %686 = vmatprep.subr.mxu0 0.0
        %687 = vmatpush1.msra.mxu0 0.0
        %688 = vmatprep.subr.mxu0 0.0
        %689 = vmatpush1.msra.mxu0 0.0
        %690 = vmatprep.subr.mxu0 0.0
        %691 = vmatpush1.msra.mxu0 0.0
        %692 = vmatprep.subr.mxu0 0.0
        %693 = vmatpush1.msra.mxu0 0.0
        %694 = vmatprep.subr.mxu0 0.0
        %695 = vmatpush1.msra.mxu0 0.0
        %696 = vmatprep.subr.mxu0 0.0
        %697 = vmatpush1.msra.mxu0 0.0
        %698 = vmatprep.subr.mxu0 0.0
        %699 = vmatpush1.msra.mxu0 0.0
        %700 = vmatprep.subr.mxu0 0.0
        %701 = vmatpush1.msra.mxu0 0.0
        %702 = vmatprep.subr.mxu0 0.0
        %703 = vmatpush1.msra.mxu0 0.0
        %704 = vmatprep.subr.mxu0 0.0
        %705 = vmatpush1.msra.mxu0 0.0
        %706 = vmatprep.subr.mxu0 0.0
        %707 = vmatpush1.msra.mxu0 0.0
        %708 = vmatprep.subr.mxu0 0.0
        %709 = vmatpush1.msra.mxu0 0.0
        %710 = vmatprep.subr.mxu0 0.0
        %711 = vmatpush1.msra.mxu0 0.0
        %712 = vmatprep.subr.mxu0 0.0
        %713 = vmatpush1.msra.mxu0 0.0
        %714 = vmatprep.subr.mxu0 0.0
        %715 = vmatpush1.msra.mxu0 0.0
        %716 = vmatprep.subr.mxu0 0.0
        %717 = vmatpush1.msra.mxu0 0.0
        %718 = vmatprep.subr.mxu0 0.0
        %719 = vmatpush1.msra.mxu0 0.0
        %720 = vmatprep.mubr.f32.mxu0 0.0
        %721 = vmatmul.mubr.f32.gmra.mrb[0].mxu0 %v561
        %v722 = vpop.f32.mrb[0].mxu0
        %v723 = vadd.f32 0.0, %v722
        %v724 = vpop.f32.mrb[0].mxu0
        %v725 = vadd.f32 0.0, %v724
        %726 = vmatprep.mubr.f32.mxu0 0.0
        %727 = vmatmul.mubr.f32.gmra.mrb[0].mxu0 %v564
        %v728 = vpop.f32.mrb[0].mxu0
        %v729 = vadd.f32 0.0, %v728
        %v730 = vpop.f32.mrb[0].mxu0
        %v731 = vadd.f32 0.0, %v730
        %732 = vmatprep.mubr.f32.mxu0 0.0
        %733 = vmatmul.mubr.f32.gmra.mrb[0].mxu0 %v567
        %v734 = vpop.f32.mrb[0].mxu0
        %v735 = vadd.f32 0.0, %v734
        %v736 = vpop.f32.mrb[0].mxu0
        %v737 = vadd.f32 0.0, %v736
        %738 = vmatprep.mubr.f32.mxu0 0.0
        %739 = vmatmul.mubr.f32.gmra.mrb[0].mxu0 %v570
        %v740 = vpop.f32.mrb[0].mxu0
        %v741 = vadd.f32 0.0, %v740
        %v742 = vpop.f32.mrb[0].mxu0
        %v743 = vadd.f32 0.0, %v742
        %744 = vmatprep.mubr.f32.mxu0 0.0
        %745 = vmatmul.mubr.f32.gmra.mrb[0].mxu0 %v573
        %v746 = vpop.f32.mrb[0].mxu0
        %v747 = vadd.f32 0.0, %v746
        %v748 = vpop.f32.mrb[0].mxu0
        %v749 = vadd.f32 0.0, %v748
        %750 = vmatprep.mubr.f32.mxu0 0.0
        %751 = vmatmul.mubr.f32.gmra.mrb[0].mxu0 %v576
        %v752 = vpop.f32.mrb[0].mxu0
        %v753 = vadd.f32 0.0, %v752
        %v754 = vpop.f32.mrb[0].mxu0
        %v755 = vadd.f32 0.0, %v754
        %756 = vmatprep.mubr.f32.mxu0 0.0
        %757 = vmatmul.mubr.f32.gmra.mrb[0].mxu0 %v579
        %v758 = vpop.f32.mrb[0].mxu0
        %v759 = vadd.f32 0.0, %v758
        %v760 = vpop.f32.mrb[0].mxu0
        %v761 = vadd.f32 0.0, %v760
        %762 = vmatprep.mubr.f32.mxu0 0.0
        %763 = vmatmul.mubr.f32.gmra.mrb[0].mxu0 %v582
        %v764 = vpop.f32.mrb[0].mxu0
        %v765 = vadd.f32 0.0, %v764
        %v766 = vpop.f32.mrb[0].mxu0
        %v767 = vadd.f32 0.0, %v766
        %768 = vmatprep.mubr.f32.mxu0 0.0
        %769 = vmatmul.mubr.f32.gmra.mrb[0].mxu0 %v585
        %v770 = vpop.f32.mrb[0].mxu0
        %v771 = vadd.f32 0.0, %v770
        %v772 = vpop.f32.mrb[0].mxu0
        %v773 = vadd.f32 0.0, %v772
        %774 = vmatprep.mubr.f32.mxu0 0.0
        %775 = vmatmul.mubr.f32.gmra.mrb[0].mxu0 %v588
        %v776 = vpop.f32.mrb[0].mxu0
        %v777 = vadd.f32 0.0, %v776
        %v778 = vpop.f32.mrb[0].mxu0
        %v779 = vadd.f32 0.0, %v778
        %780 = vmatprep.mubr.f32.mxu0 0.0
        %781 = vmatmul.mubr.f32.gmra.mrb[0].mxu0 %v591
        %v782 = vpop.f32.mrb[0].mxu0
        %v783 = vadd.f32 0.0, %v782
        %v784 = vpop.f32.mrb[0].mxu0
        %v785 = vadd.f32 0.0, %v784
        %786 = vmatprep.mubr.f32.mxu0 0.0
        %787 = vmatmul.mubr.f32.gmra.mrb[0].mxu0 %v594
        %v788 = vpop.f32.mrb[0].mxu0
        %v789 = vadd.f32 0.0, %v788
        %v790 = vpop.f32.mrb[0].mxu0
        %v791 = vadd.f32 0.0, %v790
        %792 = vmatprep.mubr.f32.mxu0 0.0
        %793 = vmatmul.mubr.f32.gmra.mrb[0].mxu0 %v597
        %v794 = vpop.f32.mrb[0].mxu0
        %v795 = vadd.f32 0.0, %v794
        %v796 = vpop.f32.mrb[0].mxu0
        %v797 = vadd.f32 0.0, %v796
        %798 = vmatprep.mubr.f32.mxu0 0.0
        %799 = vmatmul.mubr.f32.gmra.mrb[0].mxu0 %v600
        %v800 = vpop.f32.mrb[0].mxu0
        %v801 = vadd.f32 0.0, %v800
        %v802 = vpop.f32.mrb[0].mxu0
        %v803 = vadd.f32 0.0, %v802
        %804 = vmatprep.mubr.f32.mxu0 0.0
        %805 = vmatmul.mubr.f32.gmra.mrb[0].mxu0 %v603
        %v806 = vpop.f32.mrb[0].mxu0
        %v807 = vadd.f32 0.0, %v806
        %v808 = vpop.f32.mrb[0].mxu0
        %v809 = vadd.f32 0.0, %v808
        %810 = vmatprep.mubr.f32.mxu0 0.0
        %811 = vmatmul.mubr.f32.gmra.mrb[0].mxu0 %v606
        %v812 = vpop.f32.mrb[0].mxu0
        %v813 = vadd.f32 0.0, %v812
        %v814 = vpop.f32.mrb[0].mxu0
        %v815 = vadd.f32 0.0, %v814
        %816 = vmatprep.mubr.f32.mxu0 0.0
        %817 = vmatmul.mubr.f32.gmra.mrb[0].mxu0 %v609
        %v818 = vpop.f32.mrb[0].mxu0
        %v819 = vadd.f32 0.0, %v818
        %v820 = vpop.f32.mrb[0].mxu0
        %v821 = vadd.f32 0.0, %v820
        %822 = vmatprep.mubr.f32.mxu0 0.0
        %823 = vmatmul.mubr.f32.gmra.mrb[0].mxu0 %v612
        %v824 = vpop.f32.mrb[0].mxu0
        %v825 = vadd.f32 0.0, %v824
        %v826 = vpop.f32.mrb[0].mxu0
        %v827 = vadd.f32 0.0, %v826
        %828 = vmatprep.mubr.f32.mxu0 0.0
        %829 = vmatmul.mubr.f32.gmra.mrb[0].mxu0 %v615
        %v830 = vpop.f32.mrb[0].mxu0
        %v831 = vadd.f32 0.0, %v830
        %v832 = vpop.f32.mrb[0].mxu0
        %v833 = vadd.f32 0.0, %v832
        %834 = vmatprep.mubr.f32.mxu0 0.0
        %835 = vmatmul.mubr.f32.gmra.mrb[0].mxu0 %v618
        %v836 = vpop.f32.mrb[0].mxu0
        %v837 = vadd.f32 0.0, %v836
        %v838 = vpop.f32.mrb[0].mxu0
        %v839 = vadd.f32 0.0, %v838
        %840 = vmatprep.mubr.f32.mxu0 0.0
        %841 = vmatmul.mubr.f32.gmra.mrb[0].mxu0 %v621
        %v842 = vpop.f32.mrb[0].mxu0
        %v843 = vadd.f32 0.0, %v842
        %v844 = vpop.f32.mrb[0].mxu0
        %v845 = vadd.f32 0.0, %v844
        %846 = vmatprep.mubr.f32.mxu0 0.0
        %847 = vmatmul.mubr.f32.gmra.mrb[0].mxu0 %v624
        %v848 = vpop.f32.mrb[0].mxu0
        %v849 = vadd.f32 0.0, %v848
        %v850 = vpop.f32.mrb[0].mxu0
        %v851 = vadd.f32 0.0, %v850
        %852 = vmatprep.mubr.f32.mxu0 0.0
        %853 = vmatmul.mubr.f32.gmra.mrb[0].mxu0 %v627
        %v854 = vpop.f32.mrb[0].mxu0
        %v855 = vadd.f32 0.0, %v854
        %v856 = vpop.f32.mrb[0].mxu0
        %v857 = vadd.f32 0.0, %v856
        %858 = vmatprep.mubr.f32.mxu0 0.0
        %859 = vmatmul.mubr.f32.gmra.mrb[0].mxu0 %v630
        %v860 = vpop.f32.mrb[0].mxu0
        %v861 = vadd.f32 0.0, %v860
        %v862 = vpop.f32.mrb[0].mxu0
        %v863 = vadd.f32 0.0, %v862
        %864 = vmatprep.mubr.f32.mxu0 0.0
        %865 = vmatmul.mubr.f32.gmra.mrb[0].mxu0 %v633
        %v866 = vpop.f32.mrb[0].mxu0
        %v867 = vadd.f32 0.0, %v866
        %v868 = vpop.f32.mrb[0].mxu0
        %v869 = vadd.f32 0.0, %v868
        %870 = vmatprep.mubr.f32.mxu0 0.0
        %871 = vmatmul.mubr.f32.gmra.mrb[0].mxu0 %v636
        %v872 = vpop.f32.mrb[0].mxu0
        %v873 = vadd.f32 0.0, %v872
        %v874 = vpop.f32.mrb[0].mxu0
        %v875 = vadd.f32 0.0, %v874
        %876 = vmatprep.mubr.f32.mxu0 0.0
        %877 = vmatmul.mubr.f32.gmra.mrb[0].mxu0 %v639
        %v878 = vpop.f32.mrb[0].mxu0
        %v879 = vadd.f32 0.0, %v878
        %v880 = vpop.f32.mrb[0].mxu0
        %v881 = vadd.f32 0.0, %v880
        %882 = vmatprep.mubr.f32.mxu0 0.0
        %883 = vmatmul.mubr.f32.gmra.mrb[0].mxu0 %v642
        %v884 = vpop.f32.mrb[0].mxu0
        %v885 = vadd.f32 0.0, %v884
        %v886 = vpop.f32.mrb[0].mxu0
        %v887 = vadd.f32 0.0, %v886
        %888 = vmatprep.mubr.f32.mxu0 0.0
        %889 = vmatmul.mubr.f32.gmra.mrb[0].mxu0 %v645
        %v890 = vpop.f32.mrb[0].mxu0
        %v891 = vadd.f32 0.0, %v890
        %v892 = vpop.f32.mrb[0].mxu0
        %v893 = vadd.f32 0.0, %v892
        %894 = vmatprep.mubr.f32.mxu0 0.0
        %895 = vmatmul.mubr.f32.gmra.mrb[0].mxu0 %v648
        %v896 = vpop.f32.mrb[0].mxu0
        %v897 = vadd.f32 0.0, %v896
        %v898 = vpop.f32.mrb[0].mxu0
        %v899 = vadd.f32 0.0, %v898
        %900 = vmatprep.mubr.f32.mxu0 0.0
        %901 = vmatmul.mubr.f32.gmra.mrb[0].mxu0 %v651
        %v902 = vpop.f32.mrb[0].mxu0
        %v903 = vadd.f32 0.0, %v902
        %v904 = vpop.f32.mrb[0].mxu0
        %v905 = vadd.f32 0.0, %v904
        %906 = vmatprep.mubr.f32.mxu0 0.0
        %907 = vmatmul.mubr.f32.gmra.mrb[0].mxu0 %v654
        %v908 = vpop.f32.mrb[0].mxu0
        %v909 = vadd.f32 0.0, %v908
        %v910 = vpop.f32.mrb[0].mxu0
        %v911 = vadd.f32 0.0, %v910
        %912 = vdwg.mxu0
        %913 = vst [vmem:[%s121] sm:$0xff] %v723
        %914 = vst [vmem:[%s121 + $0x8] sm:$0xff] %v725
        %915 = vst [vmem:[%s121 + $0x10] sm:$0xff] %v729
        %916 = vst [vmem:[%s121 + $0x18] sm:$0xff] %v731
        %917 = vst [vmem:[%s121 + $0x20] sm:$0xff] %v735
        %918 = vst [vmem:[%s121 + $0x28] sm:$0xff] %v737
        %919 = vst [vmem:[%s121 + $0x30] sm:$0xff] %v741
        %920 = vst [vmem:[%s121 + $0x38] sm:$0xff] %v743
        %921 = vst [vmem:[%s121 + $0x40] sm:$0xff] %v747
        %922 = vst [vmem:[%s121 + $0x48] sm:$0xff] %v749
        %923 = vst [vmem:[%s121 + $0x50] sm:$0xff] %v753
        %924 = vst [vmem:[%s121 + $0x58] sm:$0xff] %v755
        %925 = vst [vmem:[%s121 + $0x60] sm:$0xff] %v759
        %926 = vst [vmem:[%s121 + $0x68] sm:$0xff] %v761
        %927 = vst [vmem:[%s121 + $0x70] sm:$0xff] %v765
        %928 = vst [vmem:[%s121 + $0x78] sm:$0xff] %v767
        %929 = vst [vmem:[%s121 + $0x80] sm:$0xff] %v771
        %930 = vst [vmem:[%s121 + $0x88] sm:$0xff] %v773
        %931 = vst [vmem:[%s121 + $0x90] sm:$0xff] %v777
        %932 = vst [vmem:[%s121 + $0x98] sm:$0xff] %v779
        %933 = vst [vmem:[%s121 + $0xa0] sm:$0xff] %v783
        %934 = vst [vmem:[%s121 + $0xa8] sm:$0xff] %v785
        %935 = vst [vmem:[%s121 + $0xb0] sm:$0xff] %v789
        %936 = vst [vmem:[%s121 + $0xb8] sm:$0xff] %v791
        %937 = vst [vmem:[%s121 + $0xc0] sm:$0xff] %v795
        %938 = vst [vmem:[%s121 + $0xc8] sm:$0xff] %v797
        %939 = vst [vmem:[%s121 + $0xd0] sm:$0xff] %v801
        %940 = vst [vmem:[%s121 + $0xd8] sm:$0xff] %v803
        %941 = vst [vmem:[%s121 + $0xe0] sm:$0xff] %v807
        %942 = vst [vmem:[%s121 + $0xe8] sm:$0xff] %v809
        %943 = vst [vmem:[%s121 + $0xf0] sm:$0xff] %v813
        %944 = vst [vmem:[%s121 + $0xf8] sm:$0xff] %v815
        %945 = vst [vmem:[%s121 + $0x100] sm:$0xff] %v819
        %946 = vst [vmem:[%s121 + $0x108] sm:$0xff] %v821
        %947 = vst [vmem:[%s121 + $0x110] sm:$0xff] %v825
        %948 = vst [vmem:[%s121 + $0x118] sm:$0xff] %v827
        %949 = vst [vmem:[%s121 + $0x120] sm:$0xff] %v831
        %950 = vst [vmem:[%s121 + $0x128] sm:$0xff] %v833
        %951 = vst [vmem:[%s121 + $0x130] sm:$0xff] %v837
        %952 = vst [vmem:[%s121 + $0x138] sm:$0xff] %v839
        %953 = vst [vmem:[%s121 + $0x140] sm:$0xff] %v843
        %954 = vst [vmem:[%s121 + $0x148] sm:$0xff] %v845
        %955 = vst [vmem:[%s121 + $0x150] sm:$0xff] %v849
        %956 = vst [vmem:[%s121 + $0x158] sm:$0xff] %v851
        %957 = vst [vmem:[%s121 + $0x160] sm:$0xff] %v855
        %958 = vst [vmem:[%s121 + $0x168] sm:$0xff] %v857
        %959 = vst [vmem:[%s121 + $0x170] sm:$0xff] %v861
        %960 = vst [vmem:[%s121 + $0x178] sm:$0xff] %v863
        %961 = vst [vmem:[%s121 + $0x180] sm:$0xff] %v867
        %962 = vst [vmem:[%s121 + $0x188] sm:$0xff] %v869
        %963 = vst [vmem:[%s121 + $0x190] sm:$0xff] %v873
        %964 = vst [vmem:[%s121 + $0x198] sm:$0xff] %v875
        %965 = vst [vmem:[%s121 + $0x1a0] sm:$0xff] %v879
        %966 = vst [vmem:[%s121 + $0x1a8] sm:$0xff] %v881
        %967 = vst [vmem:[%s121 + $0x1b0] sm:$0xff] %v885
        %968 = vst [vmem:[%s121 + $0x1b8] sm:$0xff] %v887
        %969 = vst [vmem:[%s121 + $0x1c0] sm:$0xff] %v891
        %970 = vst [vmem:[%s121 + $0x1c8] sm:$0xff] %v893
        %971 = vst [vmem:[%s121 + $0x1d0] sm:$0xff] %v897
        %972 = vst [vmem:[%s121 + $0x1d8] sm:$0xff] %v899
        %973 = vst [vmem:[%s121 + $0x1e0] sm:$0xff] %v903
        %974 = vst [vmem:[%s121 + $0x1e8] sm:$0xff] %v905
        %975 = vst [vmem:[%s121 + $0x1f0] sm:$0xff] %v909
        %976 = vst [vmem:[%s121 + $0x1f8] sm:$0xff] %v911
        %s977 = sand.u32 %s66, 1
        %s978 = scalar_lea.sflag [#allocation3], %s977
        %s979 = sand.u32 %s66, 1
        %s980 = smul.addr %s979, 512
        %s981 = scalar_lea.vmem [#allocation2], %s980
        // Predicated region
        $region29: #{tpu_custom_call.1} parent=27 // pred_check
          %p982 = pneg %p76
        $region30: #{tpu_custom_call.1} parent=27 // pred_check_branch
          %984 = sbr.rel (%p982) target = $region32
        $region31: #{tpu_custom_call.1} parent=27 // pred_region
          %s985 = smul.u32 32, %s16
          %s987 = ssub.s32 8192, 8192
          %988 = vsyncadd %s978, %s987
          %s989 = smul.addr %s985, 2
          %s990 = smul.addr %s989, 128
          %s991 = scalar_lea.hbm %s2, %s990
          %s992 = sshll.u32 %s981, 4
          %s993 = int_to_ptr.vmem [resolvable:$true] %s992
          %998 = dma.vmem_to_hbm [thread:$0]  %s993, 8192, %s991, %s978, 256, 256, 16
        $region32: #{tpu_custom_call.1} parent=27 // pred_fallthru
          _
      $region28: #{tpu_custom_call.1} parent=5 // pred_fallthru
        _
      %p999 = scmp.le.s32.totalorder 2, %s11
      // Predicated region
      $region33: #{tpu_custom_call.1} parent=5 // pred_check
        %p1000 = pneg %p999
      $region34: #{tpu_custom_call.1} parent=5 // pred_check_branch
        %1002 = sbr.rel (%p1000) target = $region36
      $region35: #{tpu_custom_call.1} parent=5 // pred_region
        %s1003 = ssub.s32 %s11, 2
        // Predicated region
        $region37: #{tpu_custom_call.1} parent=35 // pred_check
          %p1004 = pneg %p82
        $region38: #{tpu_custom_call.1} parent=35 // pred_check_branch
          %1006 = sbr.rel (%p1004) target = $region40
        $region39: #{tpu_custom_call.1} parent=35 // pred_region
          %s1007 = sand.u32 %s67, 1
          %s1008 = scalar_lea.sflag [#allocation3], %s1007
          %s1009 = sand.u32 %s67, 1
          %s1010 = smul.addr %s1009, 512
          %s1011 = scalar_lea.vmem [#allocation2], %s1010
          %1012 = dma.done %s1008, 8192
        $region40: #{tpu_custom_call.1} parent=35 // pred_fallthru
          _
      $region36: #{tpu_custom_call.1} parent=5 // pred_fallthru
        _
    $region6: #{tpu_custom_call.1} parent=1 // loop_footer
      %s15 = sadd.s32 1, %s11
    $region7: #{tpu_custom_call.1} parent=1 // loop_footer_branch
      %10 = sbr.rel target = $region3
    $region8: #{tpu_custom_call.1} parent=1 // loop_exit
      _
    %1013 = vsyncpa [#allocation3], 1
    %s1014 = scalar_lea.sflag [#allocation3], 1
    %1015 = vsyncpa %s1014, 1

</llo_original>
